<compile_context>
chip_gen: v5e
topology: v5e:2x2
jax: 0.10.0
libtpu: 0.0.40
codegen_flags: <defaults>
</compile_context>

<pallas_src>
import jax
import jax.numpy as jnp
from jax.experimental import pallas as pl
from jax.experimental.pallas import tpu as pltpu

CONTEXT_SIZE = 2
EMBEDDING_DIM = 10
HIDDEN = 128
LANE = 128
SUBLANE = 8
MAX_B_TILE = 512

test_sentence = (
    "When forty winters shall besiege thy brow,\nAnd dig deep trenches in thy "
    "beauty's field,\nThy youth's proud livery so gazed on now,\nWill be a "
    "totter'd weed of small worth held:\nThen being asked, where all thy beauty "
    "lies,\nWhere all the treasure of thy lusty days;\nTo say, within thine own "
    "deep sunken eyes,\nWere an all-eating shame, and thriftless praise.\nHow "
    "much more praise deserv'd thy beauty's use,\nIf thou couldst answer 'This "
    "fair child of mine\nShall sum my count, and make my old excuse,'\nProving "
    "his beauty by succession thine!\nThis were to be new made when thou art "
    "old,\nAnd see thy blood warm when thou feel'st it cold."
).split()

# deterministic vocab (sorted so indices are stable run-to-run)
vocb = sorted(set(test_sentence))
word_to_idx = {w: i for i, w in enumerate(vocb)}
VOCAB_SIZE = len(vocb)                                   # 97

V_PAD = ((VOCAB_SIZE + LANE - 1) // LANE) * LANE          # 128 (lane-dense logits / table rows)


def _round_up(x, m):
    return ((x + m - 1) // m) * m


def ngram_kernel(idx_ref, tbl_ref, w2_ref, b2_ref, out_ref):
    """One batch tile: (B_tile, CONTEXT_SIZE) token ids -> (B_tile, V_PAD) logits.

    tbl_ref is the stacked fused table (2*V_PAD, HIDDEN):
      rows [0, V_PAD)        = emb @ w1[:D]  + b1   (token 0 block, bias folded in)
      rows [V_PAD, 2*V_PAD)  = emb @ w1[D:]         (token 1 block)
    """
    b_tile = idx_ref.shape[0]
    ids = idx_ref[...]                                                     # (B, 2) int32

    # single "two-hot" over the stacked table: one iota + two compares (VPU only)
    lane_ids = jax.lax.broadcasted_iota(jnp.int32, (b_tile, 2 * V_PAD), 1)
    sel = (lane_ids == ids[:, 0:1]) | (lane_ids == (ids[:, 1:2] + V_PAD))
    twohot = sel.astype(jnp.float32)                                       # (B, 2*V_PAD)

    # hidden = one 256-deep matmul (b1 already folded into the token-0 rows)
    h = jnp.maximum(
        jnp.dot(twohot, tbl_ref[...], preferred_element_type=jnp.float32), 0.0
    )                                                                      # (B, HIDDEN)
    out_ref[...] = (
        jnp.dot(h, w2_ref[...], preferred_element_type=jnp.float32) + b2_ref[...]
    )


def prepare_params(emb, w1, b1, w2, b2):
    """One-time fusion/padding of the module parameters (hoisted out of forward)."""
    V, D = emb.shape
    emb = emb.astype(jnp.float32)
    w1 = w1.astype(jnp.float32)
    # exact f32 fusion (one-time cost): per-token tables emb @ w1[t*D:(t+1)*D]
    hp = jax.lax.Precision.HIGHEST
    t0 = jnp.dot(emb, w1[:D, :], precision=hp) + b1.reshape(1, HIDDEN)     # (V, 128)
    t1 = jnp.dot(emb, w1[D:, :], precision=hp)                             # (V, 128)
    tbl = jnp.zeros((2 * V_PAD, HIDDEN), jnp.float32)
    tbl = tbl.at[:V, :].set(t0).at[V_PAD:V_PAD + V, :].set(t1)

    w2_p = jnp.zeros((HIDDEN, V_PAD), jnp.float32).at[:, :V].set(w2)
    b2_p = jnp.zeros((1, V_PAD), jnp.float32).at[:, :V].set(b2.reshape(1, V))
    return tbl, w2_p, b2_p


def _choose_batch_tile(B):
    if B <= SUBLANE:
        return SUBLANE
    # >=2 tiles for medium B (keeps both v7x TensorCores busy), capped at 512 rows
    return min(_round_up((B + 1) // 2, SUBLANE), MAX_B_TILE)


@jax.jit
def n_gram_forward(idx, tbl, w2_p, b2_p):
    """Batched n_gram forward with pre-fused parameters.

    idx: (B, CONTEXT_SIZE) or (CONTEXT_SIZE,) int token ids.
    Returns (B, VOCAB_SIZE) logits; per-row semantics match
    emb[idx].view(1, -1) -> Linear(20,128) -> ReLU -> Linear(128,V).
    """
    if idx.ndim == 1:
        idx = idx[None, :]
    B = idx.shape[0]

    idx = jnp.clip(idx.astype(jnp.int32), 0, VOCAB_SIZE - 1)   # guard against OOB token ids

    b_tile = _choose_batch_tile(B)
    B_pad = _round_up(B, b_tile)
    idx_p = jnp.zeros((B_pad, CONTEXT_SIZE), jnp.int32).at[:B, :].set(idx)

    out_p = pl.pallas_call(
        ngram_kernel,
        out_shape=jax.ShapeDtypeStruct((B_pad, V_PAD), jnp.float32),
        grid=(B_pad // b_tile,),
        in_specs=[
            pl.BlockSpec((b_tile, CONTEXT_SIZE), lambda i: (i, 0)),      # token ids
            pl.BlockSpec((2 * V_PAD, HIDDEN), lambda i: (0, 0)),         # fused stacked table
            pl.BlockSpec((HIDDEN, V_PAD), lambda i: (0, 0)),             # w2 (padded)
            pl.BlockSpec((1, V_PAD), lambda i: (0, 0)),                  # b2 (padded)
        ],
        out_specs=pl.BlockSpec((b_tile, V_PAD), lambda i: (i, 0)),
        compiler_params=pltpu.CompilerParams(
            dimension_semantics=("parallel",),   # v7x: batch tiles split across both TCs
        ),
    )(idx_p, tbl, w2_p, b2_p)

    return out_p[:B, :VOCAB_SIZE]                           # drop batch + vocab padding


def reference_forward(idx, emb, w1, b1, w2, b2):
    """Exact f32 reference of the PyTorch forward."""
    if idx.ndim == 1:
        idx = idx[None, :]
    hp = jax.lax.Precision.HIGHEST
    x = emb[idx].reshape(idx.shape[0], -1)                   # (B, CONTEXT_SIZE*D)
    h = jnp.maximum(jnp.dot(x, w1, precision=hp) + b1, 0.0)
    return jnp.dot(h, w2, precision=hp) + b2


if __name__ == "__main__":
    key = jax.random.PRNGKey(0)
    k_emb, k_w1, k_b1, k_w2, k_b2 = jax.random.split(key, 5)

    # deterministic parameter init (shapes from the module's __init__)
    emb = jax.random.normal(k_emb, (VOCAB_SIZE, EMBEDDING_DIM), jnp.float32)
    w1 = 0.1 * jax.random.normal(k_w1, (CONTEXT_SIZE * EMBEDDING_DIM, HIDDEN), jnp.float32)
    b1 = 0.1 * jax.random.normal(k_b1, (1, HIDDEN), jnp.float32)
    w2 = 0.1 * jax.random.normal(k_w2, (HIDDEN, VOCAB_SIZE), jnp.float32)
    b2 = 0.1 * jax.random.normal(k_b2, (1, VOCAB_SIZE), jnp.float32)

    # one-time parameter fusion/padding (hoisted out of the forward path)
    tbl, w2_p, b2_p = prepare_params(emb, w1, b1, w2, b2)
    jax.block_until_ready(tbl)

    # all 2-word contexts of the sonnet, processed as one batch (113 rows)
    contexts = [
        [word_to_idx[test_sentence[i]], word_to_idx[test_sentence[i + 1]]]
        for i in range(len(test_sentence) - CONTEXT_SIZE)
    ]
    idx_batch = jnp.array(contexts, dtype=jnp.int32)          # (113, 2)

    out_batch = n_gram_forward(idx_batch, tbl, w2_p, b2_p)
    jax.block_until_ready(out_batch)
    ref_batch = reference_forward(idx_batch, emb, w1, b1, w2, b2)
    assert out_batch.shape == (idx_batch.shape[0], VOCAB_SIZE)
    # default-precision (bf16-pass) MXU dots vs exact f32 reference -> relaxed tolerance
    assert jnp.allclose(out_batch, ref_batch, atol=2e-2, rtol=2e-2)

    # single-context call, exactly the original module's forward: ("When","forty") -> (1, V)
    idx_single = jnp.array([word_to_idx[w] for w in test_sentence[:CONTEXT_SIZE]], jnp.int32)
    out_single = n_gram_forward(idx_single, tbl, w2_p, b2_p)
    jax.block_until_ready(out_single)
    ref_single = reference_forward(idx_single, emb, w1, b1, w2, b2)
    assert out_single.shape == (1, VOCAB_SIZE)
    assert jnp.allclose(out_single, ref_single, atol=2e-2, rtol=2e-2)
    assert jnp.allclose(out_single, out_batch[:1], atol=2e-2, rtol=2e-2)

    print("KERNEL_OK")
</pallas_src>

<mosaic_0001>
module attributes {stable_mosaic.version = 11 : i64} {
  func.func @ngram_kernel(%arg0: i32, %arg1: memref<64x2xi32, #tpu.memory_space<vmem>>, %arg2: memref<256x128xf32, #tpu.memory_space<vmem>>, %arg3: memref<128x128xf32, #tpu.memory_space<vmem>>, %arg4: memref<1x128xf32, #tpu.memory_space<vmem>>, %arg5: memref<64x128xf32, #tpu.memory_space<vmem>>) attributes {dimension_semantics = [#tpu.dimension_semantics<parallel>], iteration_bounds = array<i64: 2>, scalar_prefetch = 0 : i64, scratch_operands = 0 : i64, tpu.core_type = #tpu.core_type<tc>, window_params = [{transform_indices = @transform_0, window_bounds = array<i64: 64, 2>}, {pipeline_mode = #tpu.pipeline_mode<synchronous>, transform_indices = @transform_1, window_bounds = array<i64: 256, 128>}, {pipeline_mode = #tpu.pipeline_mode<synchronous>, transform_indices = @transform_2, window_bounds = array<i64: 128, 128>}, {pipeline_mode = #tpu.pipeline_mode<synchronous>, transform_indices = @transform_3, window_bounds = array<i64: 1, 128>}, {transform_indices = @transform_4, window_bounds = array<i64: 64, 128>}]} {
    %c0 = arith.constant 0 : index
    %c0_0 = arith.constant 0 : index
    %0 = vector.load %arg1[%c0, %c0_0] : memref<64x2xi32, #tpu.memory_space<vmem>>, vector<64x2xi32>
    %1 = tpu.iota {dimensions = array<i32: 1>} : vector<64x256xi32>
    %2 = vector.extract_strided_slice %0 {offsets = [0, 0], sizes = [64, 1], strides = [1, 1]} : vector<64x2xi32> to vector<64x1xi32>
    %3 = vector.broadcast %2 : vector<64x1xi32> to vector<64x256xi32>
    %4 = arith.cmpi eq, %1, %3 : vector<64x256xi32>
    %5 = vector.extract_strided_slice %0 {offsets = [0, 1], sizes = [64, 1], strides = [1, 1]} : vector<64x2xi32> to vector<64x1xi32>
    %c128_i32 = arith.constant 128 : i32
    %6 = vector.broadcast %c128_i32 : i32 to vector<64x1xi32>
    %7 = arith.addi %5, %6 : vector<64x1xi32>
    %8 = vector.broadcast %7 : vector<64x1xi32> to vector<64x256xi32>
    %9 = arith.cmpi eq, %1, %8 : vector<64x256xi32>
    %10 = arith.ori %4, %9 : vector<64x256xi1>
    %11 = arith.extui %10 : vector<64x256xi1> to vector<64x256xi32>
    %12 = arith.sitofp %11 : vector<64x256xi32> to vector<64x256xf32>
    %c0_1 = arith.constant 0 : index
    %c0_2 = arith.constant 0 : index
    %13 = vector.load %arg2[%c0_1, %c0_2] : memref<256x128xf32, #tpu.memory_space<vmem>>, vector<256x128xf32>
    %cst = arith.constant dense<0.000000e+00> : vector<64x128xf32>
    %14 = tpu.matmul %12, %13, %cst {dimension_numbers = #tpu.dot_dimension_numbers<[1], [0], [0], [1], [0, 0, 1, 1], [], []>} : vector<64x256xf32>, vector<256x128xf32>, vector<64x128xf32> -> vector<64x128xf32>
    %cst_3 = arith.constant 0.000000e+00 : f32
    %15 = vector.broadcast %cst_3 : f32 to vector<64x128xf32>
    %16 = arith.maximumf %14, %15 : vector<64x128xf32>
    %c0_4 = arith.constant 0 : index
    %c0_5 = arith.constant 0 : index
    %17 = vector.load %arg3[%c0_4, %c0_5] : memref<128x128xf32, #tpu.memory_space<vmem>>, vector<128x128xf32>
    %cst_6 = arith.constant dense<0.000000e+00> : vector<64x128xf32>
    %18 = tpu.matmul %16, %17, %cst_6 {dimension_numbers = #tpu.dot_dimension_numbers<[1], [0], [0], [1], [0, 0, 1, 1], [], []>} : vector<64x128xf32>, vector<128x128xf32>, vector<64x128xf32> -> vector<64x128xf32>
    %c0_7 = arith.constant 0 : index
    %c0_8 = arith.constant 0 : index
    %19 = vector.load %arg4[%c0_7, %c0_8] : memref<1x128xf32, #tpu.memory_space<vmem>>, vector<1x128xf32>
    %20 = vector.broadcast %19 : vector<1x128xf32> to vector<64x128xf32>
    %21 = arith.addf %18, %20 : vector<64x128xf32>
    %c0_9 = arith.constant 0 : index
    %c0_10 = arith.constant 0 : index
    %22 = vector.load %arg5[%c0_9, %c0_10] : memref<64x128xf32, #tpu.memory_space<vmem>>, vector<64x128xf32>
    tpu.vector_store %arg5[%c0_9, %c0_10], %21 {strides = array<i32>} : memref<64x128xf32, #tpu.memory_space<vmem>>, vector<64x128xf32>,
    return
  }
  func.func @transform_0(%arg0: i32) -> (i32, i32) {
    %c0_i32 = arith.constant 0 : i32
    %c0_i32_0 = arith.constant 0 : i32
    return %arg0, %c0_i32 : i32, i32
  }
  func.func @transform_1(%arg0: i32) -> (i32, i32) {
    %c0_i32 = arith.constant 0 : i32
    %c0_i32_0 = arith.constant 0 : i32
    %c0_i32_1 = arith.constant 0 : i32
    return %c0_i32, %c0_i32_0 : i32, i32
  }
  func.func @transform_2(%arg0: i32) -> (i32, i32) {
    %c0_i32 = arith.constant 0 : i32
    %c0_i32_0 = arith.constant 0 : i32
    %c0_i32_1 = arith.constant 0 : i32
    return %c0_i32, %c0_i32_0 : i32, i32
  }
  func.func @transform_3(%arg0: i32) -> (i32, i32) {
    %c0_i32 = arith.constant 0 : i32
    %c0_i32_0 = arith.constant 0 : i32
    %c0_i32_1 = arith.constant 0 : i32
    return %c0_i32, %c0_i32_0 : i32, i32
  }
  func.func @transform_4(%arg0: i32) -> (i32, i32) {
    %c0_i32 = arith.constant 0 : i32
    %c0_i32_0 = arith.constant 0 : i32
    return %arg0, %c0_i32 : i32, i32
  }
}

</mosaic_0001>

<llo_original>
// kernel: n_gram_forward.1
$region0: #{n_gram_forward.1}
  #allocation0 [shape = 'u32[]', space=smem, size = 0x4, offset = 0x4, fixed_abs, tag = 'smem constant byte address 0x4 - core index']
  #allocation1 [shape = 'u32[72,128]{1,0:T(1,128)}', space=vmem, size = 0x9000, scoped, tag = 'internal scratch']
  %s0 = inlined_call_operand.vmem [shape: s32[128,2], index: 0, kind: input, shape index: {}]
  %s1 = inlined_call_operand.vmem [shape: f32[256,128], index: 1, kind: input, shape index: {}]
  %s2 = inlined_call_operand.vmem [shape: f32[128,128], index: 2, kind: input, shape index: {}]
  %s3 = inlined_call_operand.vmem [shape: f32[1,128], index: 3, kind: input, shape index: {}]
  %s4 = inlined_call_operand.vmem [shape: f32[128,128], index: 4, kind: output, shape index: {}]
  %s5 = sld [smem:[#allocation0]]
  $region49: #{n_gram_forward.1} parent=0
    _
  %s7 = ssub.s32 1, %s5
  %s8 = scalar_select 0, %s7, %s5
  loop: start=0, step=1, limit=4
  $region2: #{n_gram_forward.1} parent=0 // loop_pre_header
    _
  $region3: #{n_gram_forward.1} parent=0 // loop_header
    %s10 = sphi 0, %s14
    %p11 = scmp.ge.s32.totalorder %s10, 4
    %s20 = sphi 0, %s22
    %s23 = sphi 0, %s20
    %s24 = sphi 0, %s23
    %s40 = sphi 0, %s24
    %s44 = sphi 0, %s44
    %s46 = sphi 0, %s44
    %s47 = sphi 0, %s46
    %s61 = sphi 0, %s47
    %s65 = sphi 0, %s65
    %s67 = sphi 0, %s65
    %s68 = sphi 0, %s67
    %s82 = sphi 0, %s68
    %s86 = sphi 0, %s86
    %s88 = sphi 0, %s86
    %s89 = sphi 0, %s88
    %s103 = sphi 0, %s89
    %s109 = sphi 0, %s111
    %s112 = sphi 0, %s109
    %s113 = sphi 0, %s112
    %s129 = sphi 0, %s113
  $region4: #{n_gram_forward.1} parent=0 // loop_header_branch
    %13 = sbr.rel (%p11) target = $region8
  $region5: #{n_gram_forward.1} parent=0 // loop_body
    %s15 = ssub.s32 %s10, 1
    %s16 = ssub.s32 %s10, 2
    %s17 = sadd.s32 %s10, 1
    %s18 = ssub.s32 %s10, %s17
    %p19 = scmp.eq.s32.totalorder %s18, 0
    %s21 = sadd.s32 %s20, 1
    %s22 = scalar_select %p19, %s20, %s21
    %p25 = pneg %p19
    %p26 = scmp.eq.s32.totalorder %s10, 1
    %p27 = por %p25, %p26
    %p28 = scmp.ne.s32.totalorder %s20, %s23
    %p29 = scmp.eq.s32.totalorder %s10, 0
    %p30 = por %p28, %p29
    %p31 = scmp.ne.s32.totalorder %s20, %s23
    %p32 = scmp.eq.s32.totalorder %s15, 1
    %p33 = por %p31, %p32
    %p34 = scmp.ne.s32.totalorder %s23, %s24
    %p35 = scmp.eq.s32.totalorder %s15, 0
    %p36 = por %p34, %p35
    %p37 = scmp.ne.s32.totalorder %s23, %s24
    %p38 = scmp.eq.s32.totalorder %s16, 1
    %p39 = por %p37, %p38
    %p41 = scmp.ne.s32.totalorder %s24, %s40
    %p42 = scmp.eq.s32.totalorder %s16, 0
    %p43 = por %p41, %p42
    %s45 = sadd.s32 %s44, 1
    %p48 = scmp.eq.s32.totalorder %s10, 1
    %p49 = scmp.ne.s32.totalorder %s44, %s46
    %p50 = scmp.eq.s32.totalorder %s10, 0
    %p51 = por %p49, %p50
    %p52 = scmp.ne.s32.totalorder %s44, %s46
    %p53 = scmp.eq.s32.totalorder %s15, 1
    %p54 = por %p52, %p53
    %p55 = scmp.ne.s32.totalorder %s46, %s47
    %p56 = scmp.eq.s32.totalorder %s15, 0
    %p57 = por %p55, %p56
    %p58 = scmp.ne.s32.totalorder %s46, %s47
    %p59 = scmp.eq.s32.totalorder %s16, 1
    %p60 = por %p58, %p59
    %p62 = scmp.ne.s32.totalorder %s47, %s61
    %p63 = scmp.eq.s32.totalorder %s16, 0
    %p64 = por %p62, %p63
    %s66 = sadd.s32 %s65, 1
    %p69 = scmp.eq.s32.totalorder %s10, 1
    %p70 = scmp.ne.s32.totalorder %s65, %s67
    %p71 = scmp.eq.s32.totalorder %s10, 0
    %p72 = por %p70, %p71
    %p73 = scmp.ne.s32.totalorder %s65, %s67
    %p74 = scmp.eq.s32.totalorder %s15, 1
    %p75 = por %p73, %p74
    %p76 = scmp.ne.s32.totalorder %s67, %s68
    %p77 = scmp.eq.s32.totalorder %s15, 0
    %p78 = por %p76, %p77
    %p79 = scmp.ne.s32.totalorder %s67, %s68
    %p80 = scmp.eq.s32.totalorder %s16, 1
    %p81 = por %p79, %p80
    %p83 = scmp.ne.s32.totalorder %s68, %s82
    %p84 = scmp.eq.s32.totalorder %s16, 0
    %p85 = por %p83, %p84
    %s87 = sadd.s32 %s86, 1
    %p90 = scmp.eq.s32.totalorder %s10, 1
    %p91 = scmp.ne.s32.totalorder %s86, %s88
    %p92 = scmp.eq.s32.totalorder %s10, 0
    %p93 = por %p91, %p92
    %p94 = scmp.ne.s32.totalorder %s86, %s88
    %p95 = scmp.eq.s32.totalorder %s15, 1
    %p96 = por %p94, %p95
    %p97 = scmp.ne.s32.totalorder %s88, %s89
    %p98 = scmp.eq.s32.totalorder %s15, 0
    %p99 = por %p97, %p98
    %p100 = scmp.ne.s32.totalorder %s88, %s89
    %p101 = scmp.eq.s32.totalorder %s16, 1
    %p102 = por %p100, %p101
    %p104 = scmp.ne.s32.totalorder %s89, %s103
    %p105 = scmp.eq.s32.totalorder %s16, 0
    %p106 = por %p104, %p105
    %s107 = ssub.s32 %s10, %s17
    %p108 = scmp.eq.s32.totalorder %s107, 0
    %s110 = sadd.s32 %s109, 1
    %s111 = scalar_select %p108, %s109, %s110
    %p114 = pneg %p108
    %p115 = scmp.eq.s32.totalorder %s10, 1
    %p116 = por %p114, %p115
    %p117 = scmp.ne.s32.totalorder %s109, %s112
    %p118 = scmp.eq.s32.totalorder %s10, 0
    %p119 = por %p117, %p118
    %p120 = scmp.ne.s32.totalorder %s109, %s112
    %p121 = scmp.eq.s32.totalorder %s15, 1
    %p122 = por %p120, %p121
    %p123 = scmp.ne.s32.totalorder %s112, %s113
    %p124 = scmp.eq.s32.totalorder %s15, 0
    %p125 = por %p123, %p124
    %p126 = scmp.ne.s32.totalorder %s112, %s113
    %p127 = scmp.eq.s32.totalorder %s16, 1
    %p128 = por %p126, %p127
    %p130 = scmp.ne.s32.totalorder %s113, %s129
    %p131 = scmp.eq.s32.totalorder %s16, 0
    %p132 = por %p130, %p131
    %p133 = scmp.le.s32.totalorder 1, %s10
    %p134 = scmp.lt.s32.totalorder %s10, 3
    %p135 = pnand %p133, %p134
    %p136 = pneg %p135
    // Predicated region
    $region9: #{n_gram_forward.1} parent=5 // pred_check
      _
    $region10: #{n_gram_forward.1} parent=5 // pred_check_branch
      %138 = sbr.rel (%p135) target = $region12
    $region11: #{n_gram_forward.1} parent=5 // pred_region
      %s139 = ssub.s32 %s10, 1
      // Predicated region
      $region13: #{n_gram_forward.1} parent=11 // pred_check
        %p140 = pneg %p57
      $region14: #{n_gram_forward.1} parent=11 // pred_check_branch
        %142 = sbr.rel (%p140) target = $region16
      $region15: #{n_gram_forward.1} parent=11 // pred_region
        _
      $region16: #{n_gram_forward.1} parent=11 // pred_fallthru
        _
      // Predicated region
      $region17: #{n_gram_forward.1} parent=11 // pred_check
        %p143 = pneg %p78
      $region18: #{n_gram_forward.1} parent=11 // pred_check_branch
        %145 = sbr.rel (%p143) target = $region20
      $region19: #{n_gram_forward.1} parent=11 // pred_region
        _
      $region20: #{n_gram_forward.1} parent=11 // pred_fallthru
        _
      // Predicated region
      $region21: #{n_gram_forward.1} parent=11 // pred_check
        %p146 = pneg %p99
      $region22: #{n_gram_forward.1} parent=11 // pred_check_branch
        %148 = sbr.rel (%p146) target = $region24
      $region23: #{n_gram_forward.1} parent=11 // pred_region
        _
      $region24: #{n_gram_forward.1} parent=11 // pred_fallthru
        _
    $region12: #{n_gram_forward.1} parent=5 // pred_fallthru
      _
    %p149 = scmp.lt.s32.totalorder %s10, 2
    // Predicated region
    $region25: #{n_gram_forward.1} parent=5 // pred_check
      %p150 = pneg %p149
    $region26: #{n_gram_forward.1} parent=5 // pred_check_branch
      %152 = sbr.rel (%p150) target = $region28
    $region27: #{n_gram_forward.1} parent=5 // pred_region
      // Predicated region
      $region29: #{n_gram_forward.1} parent=27 // pred_check
        %p153 = pneg %p30
      $region30: #{n_gram_forward.1} parent=27 // pred_check_branch
        %155 = sbr.rel (%p153) target = $region32
      $region31: #{n_gram_forward.1} parent=27 // pred_region
        %s156 = smul.u32 8, %s10
        %p157 = scmp.lt.s32.totalorder %s156, 15
        %s158 = scalar_select %p157, %s156, 15
        %s159 = smul.addr %s158, 8
        %s160 = scalar_lea.vmem %s0, %s159
        %s161 = smul.u32 8, %s10
      $region32: #{n_gram_forward.1} parent=27 // pred_fallthru
        _
    $region28: #{n_gram_forward.1} parent=5 // pred_fallthru
      _
    %p162 = scmp.le.s32.totalorder 1, %s10
    %p163 = scmp.lt.s32.totalorder %s10, 3
    %p164 = pnand %p162, %p163
    %p165 = pneg %p164
    // Predicated region
    $region33: #{n_gram_forward.1} parent=5 // pred_check
      _
    $region34: #{n_gram_forward.1} parent=5 // pred_check_branch
      %167 = sbr.rel (%p164) target = $region36
    $region35: #{n_gram_forward.1} parent=5 // pred_region
      %s168 = ssub.s32 %s10, 1
      %s169 = smul.u32 8, %s15
      %p170 = scmp.lt.s32.totalorder %s169, 15
      %s171 = scalar_select %p170, %s169, 15
      %s172 = smul.addr %s171, 8
      %s173 = scalar_lea.vmem %s0, %s172
      %p174 = pneg %p36
      %p175 = pneg %p33
      %p176 = pneg %p57
      %p177 = pneg %p54
      %p178 = pneg %p78
      %p179 = pneg %p75
      %p180 = pneg %p99
      %p181 = pneg %p96
      %p182 = pneg %p125
      %p183 = pneg %p122
      %s184 = smul.u32 8, %s15
      %p185 = scmp.lt.s32.totalorder %s184, 15
      %s186 = scalar_select %p185, %s184, 15
      %s187 = smul.addr %s186, 8
      %s188 = scalar_lea.vmem %s4, %s187
      %s189 = smul.u32 8, %s15
      %p190 = scmp.lt.s32.totalorder %s189, 15
      %s191 = scalar_select %p190, %s189, 15
      %s192 = smul.addr %s191, 8
      %s193 = scalar_lea.vmem %s0, %s192
      %s194 = smul.u32 8, %s15
      %s195 = smul.u32 8, %s15
      %p196 = scmp.lt.s32.totalorder %s195, 15
      %s197 = scalar_select %p196, %s195, 15
      %s198 = smul.addr %s197, 8
      %s199 = scalar_lea.vmem %s4, %s198
      %s200 = smul.u32 8, %s15
      %v201 = vld [vmem:[%s193] sm:$0xff]
      %v202 = vld [vmem:[%s193 + $0x8] sm:$0xff]
      %v203 = vld [vmem:[%s193 + $0x10] sm:$0xff]
      %v204 = vld [vmem:[%s193 + $0x18] sm:$0xff]
      %v205 = vld [vmem:[%s193 + $0x20] sm:$0xff]
      %v206 = vld [vmem:[%s193 + $0x28] sm:$0xff]
      %v207 = vld [vmem:[%s193 + $0x30] sm:$0xff]
      %v208 = vld [vmem:[%s193 + $0x38] sm:$0xff]
      %v209 = vlaneseq
      %v210 = vand.u32 %v209, 127
      %v211 = vadd.s32 %v210, 128
      %212 = vset.pattern.permute.xlu0 0
      %213 = vperm.xlu0 %212, %v201
      %v214 = vpop.permute.xlu0 %213
      %215 = vset.pattern.permute.xlu0 0
      %216 = vperm.xlu0 %215, %v202
      %v217 = vpop.permute.xlu0 %216
      %218 = vset.pattern.permute.xlu0 0
      %219 = vperm.xlu0 %218, %v203
      %v220 = vpop.permute.xlu0 %219
      %221 = vset.pattern.permute.xlu0 0
      %222 = vperm.xlu0 %221, %v204
      %v223 = vpop.permute.xlu0 %222
      %224 = vset.pattern.permute.xlu0 0
      %225 = vperm.xlu0 %224, %v205
      %v226 = vpop.permute.xlu0 %225
      %227 = vset.pattern.permute.xlu0 0
      %228 = vperm.xlu0 %227, %v206
      %v229 = vpop.permute.xlu0 %228
      %230 = vset.pattern.permute.xlu0 0
      %231 = vperm.xlu0 %230, %v207
      %v232 = vpop.permute.xlu0 %231
      %233 = vset.pattern.permute.xlu0 0
      %234 = vperm.xlu0 %233, %v208
      %v235 = vpop.permute.xlu0 %234
      %vm236 = vcmp.eq.s32.totalorder %v210, %v214
      %vm237 = vcmp.eq.s32.totalorder %v211, %v214
      %vm238 = vcmp.eq.s32.totalorder %v210, %v217
      %vm239 = vcmp.eq.s32.totalorder %v211, %v217
      %vm240 = vcmp.eq.s32.totalorder %v210, %v220
      %vm241 = vcmp.eq.s32.totalorder %v211, %v220
      %vm242 = vcmp.eq.s32.totalorder %v210, %v223
      %vm243 = vcmp.eq.s32.totalorder %v211, %v223
      %vm244 = vcmp.eq.s32.totalorder %v210, %v226
      %vm245 = vcmp.eq.s32.totalorder %v211, %v226
      %vm246 = vcmp.eq.s32.totalorder %v210, %v229
      %vm247 = vcmp.eq.s32.totalorder %v211, %v229
      %vm248 = vcmp.eq.s32.totalorder %v210, %v232
      %vm249 = vcmp.eq.s32.totalorder %v211, %v232
      %vm250 = vcmp.eq.s32.totalorder %v210, %v235
      %vm251 = vcmp.eq.s32.totalorder %v211, %v235
      %v252 = vadd.s32 %v201, 128
      %v253 = vadd.s32 %v202, 128
      %v254 = vadd.s32 %v203, 128
      %v255 = vadd.s32 %v204, 128
      %v256 = vadd.s32 %v205, 128
      %v257 = vadd.s32 %v206, 128
      %v258 = vadd.s32 %v207, 128
      %v259 = vadd.s32 %v208, 128
      %260 = vset.pattern.permute.xlu0 1
      %261 = vperm.xlu0 %260, %v252
      %v262 = vpop.permute.xlu0 %261
      %263 = vset.pattern.permute.xlu0 1
      %264 = vperm.xlu0 %263, %v253
      %v265 = vpop.permute.xlu0 %264
      %266 = vset.pattern.permute.xlu0 1
      %267 = vperm.xlu0 %266, %v254
      %v268 = vpop.permute.xlu0 %267
      %269 = vset.pattern.permute.xlu0 1
      %270 = vperm.xlu0 %269, %v255
      %v271 = vpop.permute.xlu0 %270
      %272 = vset.pattern.permute.xlu0 1
      %273 = vperm.xlu0 %272, %v256
      %v274 = vpop.permute.xlu0 %273
      %275 = vset.pattern.permute.xlu0 1
      %276 = vperm.xlu0 %275, %v257
      %v277 = vpop.permute.xlu0 %276
      %278 = vset.pattern.permute.xlu0 1
      %279 = vperm.xlu0 %278, %v258
      %v280 = vpop.permute.xlu0 %279
      %281 = vset.pattern.permute.xlu0 1
      %282 = vperm.xlu0 %281, %v259
      %v283 = vpop.permute.xlu0 %282
      %vm284 = vcmp.eq.s32.totalorder %v210, %v262
      %vm285 = vcmp.eq.s32.totalorder %v211, %v262
      %vm286 = vcmp.eq.s32.totalorder %v210, %v265
      %vm287 = vcmp.eq.s32.totalorder %v211, %v265
      %vm288 = vcmp.eq.s32.totalorder %v210, %v268
      %vm289 = vcmp.eq.s32.totalorder %v211, %v268
      %vm290 = vcmp.eq.s32.totalorder %v210, %v271
      %vm291 = vcmp.eq.s32.totalorder %v211, %v271
      %vm292 = vcmp.eq.s32.totalorder %v210, %v274
      %vm293 = vcmp.eq.s32.totalorder %v211, %v274
      %vm294 = vcmp.eq.s32.totalorder %v210, %v277
      %vm295 = vcmp.eq.s32.totalorder %v211, %v277
      %vm296 = vcmp.eq.s32.totalorder %v210, %v280
      %vm297 = vcmp.eq.s32.totalorder %v211, %v280
      %vm298 = vcmp.eq.s32.totalorder %v210, %v283
      %vm299 = vcmp.eq.s32.totalorder %v211, %v283
      %vm300 = vmor %vm236, %vm284
      %vm301 = vmor %vm237, %vm285
      %vm302 = vmor %vm238, %vm286
      %vm303 = vmor %vm239, %vm287
      %vm304 = vmor %vm240, %vm288
      %vm305 = vmor %vm241, %vm289
      %vm306 = vmor %vm242, %vm290
      %vm307 = vmor %vm243, %vm291
      %vm308 = vmor %vm244, %vm292
      %vm309 = vmor %vm245, %vm293
      %vm310 = vmor %vm246, %vm294
      %vm311 = vmor %vm247, %vm295
      %vm312 = vmor %vm248, %vm296
      %vm313 = vmor %vm249, %vm297
      %vm314 = vmor %vm250, %vm298
      %vm315 = vmor %vm251, %vm299
      %v316 = vsel %vm300, 1, 0
      %v317 = vsel %vm301, 1, 0
      %v318 = vsel %vm302, 1, 0
      %v319 = vsel %vm303, 1, 0
      %v320 = vsel %vm304, 1, 0
      %v321 = vsel %vm305, 1, 0
      %v322 = vsel %vm306, 1, 0
      %v323 = vsel %vm307, 1, 0
      %v324 = vsel %vm308, 1, 0
      %v325 = vsel %vm309, 1, 0
      %v326 = vsel %vm310, 1, 0
      %v327 = vsel %vm311, 1, 0
      %v328 = vsel %vm312, 1, 0
      %v329 = vsel %vm313, 1, 0
      %v330 = vsel %vm314, 1, 0
      %v331 = vsel %vm315, 1, 0
      %v332 = vcvt.s32.f32 %v316
      %v333 = vcvt.s32.f32 %v317
      %v334 = vcvt.s32.f32 %v318
      %v335 = vcvt.s32.f32 %v319
      %v336 = vcvt.s32.f32 %v320
      %v337 = vcvt.s32.f32 %v321
      %v338 = vcvt.s32.f32 %v322
      %v339 = vcvt.s32.f32 %v323
      %v340 = vcvt.s32.f32 %v324
      %v341 = vcvt.s32.f32 %v325
      %v342 = vcvt.s32.f32 %v326
      %v343 = vcvt.s32.f32 %v327
      %v344 = vcvt.s32.f32 %v328
      %v345 = vcvt.s32.f32 %v329
      %v346 = vcvt.s32.f32 %v330
      %v347 = vcvt.s32.f32 %v331
      %v348 = vld [vmem:[%s1] sm:$0xff]
      %v349 = vld [vmem:[%s1 + $0x8] sm:$0xff]
      %v350 = vld [vmem:[%s1 + $0x10] sm:$0xff]
      %v351 = vld [vmem:[%s1 + $0x18] sm:$0xff]
      %v352 = vld [vmem:[%s1 + $0x20] sm:$0xff]
      %v353 = vld [vmem:[%s1 + $0x28] sm:$0xff]
      %v354 = vld [vmem:[%s1 + $0x30] sm:$0xff]
      %v355 = vld [vmem:[%s1 + $0x38] sm:$0xff]
      %v356 = vld [vmem:[%s1 + $0x40] sm:$0xff]
      %v357 = vld [vmem:[%s1 + $0x48] sm:$0xff]
      %v358 = vld [vmem:[%s1 + $0x50] sm:$0xff]
      %v359 = vld [vmem:[%s1 + $0x58] sm:$0xff]
      %v360 = vld [vmem:[%s1 + $0x60] sm:$0xff]
      %v361 = vld [vmem:[%s1 + $0x68] sm:$0xff]
      %v362 = vld [vmem:[%s1 + $0x70] sm:$0xff]
      %v363 = vld [vmem:[%s1 + $0x78] sm:$0xff]
      %v364 = vld [vmem:[%s1 + $0x80] sm:$0xff]
      %v365 = vld [vmem:[%s1 + $0x88] sm:$0xff]
      %v366 = vld [vmem:[%s1 + $0x90] sm:$0xff]
      %v367 = vld [vmem:[%s1 + $0x98] sm:$0xff]
      %v368 = vld [vmem:[%s1 + $0xa0] sm:$0xff]
      %v369 = vld [vmem:[%s1 + $0xa8] sm:$0xff]
      %v370 = vld [vmem:[%s1 + $0xb0] sm:$0xff]
      %v371 = vld [vmem:[%s1 + $0xb8] sm:$0xff]
      %v372 = vld [vmem:[%s1 + $0xc0] sm:$0xff]
      %v373 = vld [vmem:[%s1 + $0xc8] sm:$0xff]
      %v374 = vld [vmem:[%s1 + $0xd0] sm:$0xff]
      %v375 = vld [vmem:[%s1 + $0xd8] sm:$0xff]
      %v376 = vld [vmem:[%s1 + $0xe0] sm:$0xff]
      %v377 = vld [vmem:[%s1 + $0xe8] sm:$0xff]
      %v378 = vld [vmem:[%s1 + $0xf0] sm:$0xff]
      %v379 = vld [vmem:[%s1 + $0xf8] sm:$0xff]
      %380 = vmatpush.msra.mxu0 %v363
      %381 = vmatpush.msra.mxu0 %v362
      %382 = vmatpush.msra.mxu0 %v361
      %383 = vmatpush.msra.mxu0 %v360
      %384 = vmatpush.msra.mxu0 %v359
      %385 = vmatpush.msra.mxu0 %v358
      %386 = vmatpush.msra.mxu0 %v357
      %387 = vmatpush.msra.mxu0 %v356
      %388 = vmatpush.msra.mxu0 %v355
      %389 = vmatpush.msra.mxu0 %v354
      %390 = vmatpush.msra.mxu0 %v353
      %391 = vmatpush.msra.mxu0 %v352
      %392 = vmatpush.msra.mxu0 %v351
      %393 = vmatpush.msra.mxu0 %v350
      %394 = vmatpush.msra.mxu0 %v349
      %395 = vmatpush.msra.mxu0 %v348
      %396 = vmatmul.f32.gmra.mxu0 %v332
      %v397 = vpop.f32.mrf.mxu0
      %v398 = vadd.f32 0.0, %v397
      %399 = vmatmul.f32.gmra.mxu0 %v334
      %v400 = vpop.f32.mrf.mxu0
      %v401 = vadd.f32 0.0, %v400
      %402 = vmatmul.f32.gmra.mxu0 %v336
      %v403 = vpop.f32.mrf.mxu0
      %v404 = vadd.f32 0.0, %v403
      %405 = vmatmul.f32.gmra.mxu0 %v338
      %v406 = vpop.f32.mrf.mxu0
      %v407 = vadd.f32 0.0, %v406
      %408 = vmatmul.f32.gmra.mxu0 %v340
      %v409 = vpop.f32.mrf.mxu0
      %v410 = vadd.f32 0.0, %v409
      %411 = vmatmul.f32.gmra.mxu0 %v342
      %v412 = vpop.f32.mrf.mxu0
      %v413 = vadd.f32 0.0, %v412
      %414 = vmatmul.f32.gmra.mxu0 %v344
      %v415 = vpop.f32.mrf.mxu0
      %v416 = vadd.f32 0.0, %v415
      %417 = vmatmul.f32.gmra.mxu0 %v346
      %v418 = vpop.f32.mrf.mxu0
      %v419 = vadd.f32 0.0, %v418
      %420 = vdwg.mxu0
      %421 = vmatpush.msra.mxu0 %v379
      %422 = vmatpush.msra.mxu0 %v378
      %423 = vmatpush.msra.mxu0 %v377
      %424 = vmatpush.msra.mxu0 %v376
      %425 = vmatpush.msra.mxu0 %v375
      %426 = vmatpush.msra.mxu0 %v374
      %427 = vmatpush.msra.mxu0 %v373
      %428 = vmatpush.msra.mxu0 %v372
      %429 = vmatpush.msra.mxu0 %v371
      %430 = vmatpush.msra.mxu0 %v370
      %431 = vmatpush.msra.mxu0 %v369
      %432 = vmatpush.msra.mxu0 %v368
      %433 = vmatpush.msra.mxu0 %v367
      %434 = vmatpush.msra.mxu0 %v366
      %435 = vmatpush.msra.mxu0 %v365
      %436 = vmatpush.msra.mxu0 %v364
      %437 = vmatmul.f32.gmra.mxu0 %v333
      %v438 = vpop.f32.mrf.mxu0
      %v439 = vadd.f32 %v398, %v438
      %440 = vmatmul.f32.gmra.mxu0 %v335
      %v441 = vpop.f32.mrf.mxu0
      %v442 = vadd.f32 %v401, %v441
      %443 = vmatmul.f32.gmra.mxu0 %v337
      %v444 = vpop.f32.mrf.mxu0
      %v445 = vadd.f32 %v404, %v444
      %446 = vmatmul.f32.gmra.mxu0 %v339
      %v447 = vpop.f32.mrf.mxu0
      %v448 = vadd.f32 %v407, %v447
      %449 = vmatmul.f32.gmra.mxu0 %v341
      %v450 = vpop.f32.mrf.mxu0
      %v451 = vadd.f32 %v410, %v450
      %452 = vmatmul.f32.gmra.mxu0 %v343
      %v453 = vpop.f32.mrf.mxu0
      %v454 = vadd.f32 %v413, %v453
      %455 = vmatmul.f32.gmra.mxu0 %v345
      %v456 = vpop.f32.mrf.mxu0
      %v457 = vadd.f32 %v416, %v456
      %458 = vmatmul.f32.gmra.mxu0 %v347
      %v459 = vpop.f32.mrf.mxu0
      %v460 = vadd.f32 %v419, %v459
      %461 = vdwg.mxu0
      %v462 = vmax.f32 %v439, 0.0
      %v463 = vmax.f32 %v442, 0.0
      %v464 = vmax.f32 %v445, 0.0
      %v465 = vmax.f32 %v448, 0.0
      %v466 = vmax.f32 %v451, 0.0
      %v467 = vmax.f32 %v454, 0.0
      %v468 = vmax.f32 %v457, 0.0
      %v469 = vmax.f32 %v460, 0.0
      %v470 = vld [vmem:[%s2] sm:$0xff]
      %v471 = vld [vmem:[%s2 + $0x8] sm:$0xff]
      %v472 = vld [vmem:[%s2 + $0x10] sm:$0xff]
      %v473 = vld [vmem:[%s2 + $0x18] sm:$0xff]
      %v474 = vld [vmem:[%s2 + $0x20] sm:$0xff]
      %v475 = vld [vmem:[%s2 + $0x28] sm:$0xff]
      %v476 = vld [vmem:[%s2 + $0x30] sm:$0xff]
      %v477 = vld [vmem:[%s2 + $0x38] sm:$0xff]
      %v478 = vld [vmem:[%s2 + $0x40] sm:$0xff]
      %v479 = vld [vmem:[%s2 + $0x48] sm:$0xff]
      %v480 = vld [vmem:[%s2 + $0x50] sm:$0xff]
      %v481 = vld [vmem:[%s2 + $0x58] sm:$0xff]
      %v482 = vld [vmem:[%s2 + $0x60] sm:$0xff]
      %v483 = vld [vmem:[%s2 + $0x68] sm:$0xff]
      %v484 = vld [vmem:[%s2 + $0x70] sm:$0xff]
      %v485 = vld [vmem:[%s2 + $0x78] sm:$0xff]
      %v486 = vld [vmem:[%s3] sm:$0x1]
      %v488 = vperm.slane %v486, 0
      %490 = vmatpush.msra.mxu0 %v485
      %491 = vmatpush.msra.mxu0 %v484
      %492 = vmatpush.msra.mxu0 %v483
      %493 = vmatpush.msra.mxu0 %v482
      %494 = vmatpush.msra.mxu0 %v481
      %495 = vmatpush.msra.mxu0 %v480
      %496 = vmatpush.msra.mxu0 %v479
      %497 = vmatpush.msra.mxu0 %v478
      %498 = vmatpush.msra.mxu0 %v477
      %499 = vmatpush.msra.mxu0 %v476
      %500 = vmatpush.msra.mxu0 %v475
      %501 = vmatpush.msra.mxu0 %v474
      %502 = vmatpush.msra.mxu0 %v473
      %503 = vmatpush.msra.mxu0 %v472
      %504 = vmatpush.msra.mxu0 %v471
      %505 = vmatpush.msra.mxu0 %v470
      %506 = vmatmul.f32.gmra.mxu0 %v462
      %v507 = vpop.f32.mrf.mxu0
      %v508 = vadd.f32 %v488, %v507
      %509 = vmatmul.f32.gmra.mxu0 %v463
      %v510 = vpop.f32.mrf.mxu0
      %v511 = vadd.f32 %v488, %v510
      %512 = vmatmul.f32.gmra.mxu0 %v464
      %v513 = vpop.f32.mrf.mxu0
      %v514 = vadd.f32 %v488, %v513
      %515 = vmatmul.f32.gmra.mxu0 %v465
      %v516 = vpop.f32.mrf.mxu0
      %v517 = vadd.f32 %v488, %v516
      %518 = vmatmul.f32.gmra.mxu0 %v466
      %v519 = vpop.f32.mrf.mxu0
      %v520 = vadd.f32 %v488, %v519
      %521 = vmatmul.f32.gmra.mxu0 %v467
      %v522 = vpop.f32.mrf.mxu0
      %v523 = vadd.f32 %v488, %v522
      %524 = vmatmul.f32.gmra.mxu0 %v468
      %v525 = vpop.f32.mrf.mxu0
      %v526 = vadd.f32 %v488, %v525
      %527 = vmatmul.f32.gmra.mxu0 %v469
      %v528 = vpop.f32.mrf.mxu0
      %v529 = vadd.f32 %v488, %v528
      %530 = vdwg.mxu0
      %531 = vst [vmem:[%s199] sm:$0xff] %v508
      %532 = vst [vmem:[%s199 + $0x8] sm:$0xff] %v511
      %533 = vst [vmem:[%s199 + $0x10] sm:$0xff] %v514
      %534 = vst [vmem:[%s199 + $0x18] sm:$0xff] %v517
      %535 = vst [vmem:[%s199 + $0x20] sm:$0xff] %v520
      %536 = vst [vmem:[%s199 + $0x28] sm:$0xff] %v523
      %537 = vst [vmem:[%s199 + $0x30] sm:$0xff] %v526
      %538 = vst [vmem:[%s199 + $0x38] sm:$0xff] %v529
      %s539 = smul.u32 8, %s15
      %p540 = scmp.lt.s32.totalorder %s539, 15
      %s541 = scalar_select %p540, %s539, 15
      %s542 = smul.addr %s541, 8
      %s543 = scalar_lea.vmem %s4, %s542
      // Predicated region
      $region37: #{n_gram_forward.1} parent=35 // pred_check
        %p544 = pneg %p122
      $region38: #{n_gram_forward.1} parent=35 // pred_check_branch
        %546 = sbr.rel (%p544) target = $region40
      $region39: #{n_gram_forward.1} parent=35 // pred_region
        %s547 = smul.u32 8, %s15
      $region40: #{n_gram_forward.1} parent=35 // pred_fallthru
        _
    $region36: #{n_gram_forward.1} parent=5 // pred_fallthru
      _
    %p548 = scmp.le.s32.totalorder 2, %s10
    // Predicated region
    $region41: #{n_gram_forward.1} parent=5 // pred_check
      %p549 = pneg %p548
    $region42: #{n_gram_forward.1} parent=5 // pred_check_branch
      %551 = sbr.rel (%p549) target = $region44
    $region43: #{n_gram_forward.1} parent=5 // pred_region
      %s552 = ssub.s32 %s10, 2
      // Predicated region
      $region45: #{n_gram_forward.1} parent=43 // pred_check
        %p553 = pneg %p128
      $region46: #{n_gram_forward.1} parent=43 // pred_check_branch
        %555 = sbr.rel (%p553) target = $region48
      $region47: #{n_gram_forward.1} parent=43 // pred_region
        %s556 = smul.u32 8, %s16
        %p557 = scmp.lt.s32.totalorder %s556, 15
        %s558 = scalar_select %p557, %s556, 15
        %s559 = smul.addr %s558, 8
        %s560 = scalar_lea.vmem %s4, %s559
      $region48: #{n_gram_forward.1} parent=43 // pred_fallthru
        _
    $region44: #{n_gram_forward.1} parent=5 // pred_fallthru
      _
  $region6: #{n_gram_forward.1} parent=0 // loop_footer
    %s14 = sadd.s32 1, %s10
  $region7: #{n_gram_forward.1} parent=0 // loop_footer_branch
    %9 = sbr.rel target = $region3
  $region8: #{n_gram_forward.1} parent=0 // loop_exit
    _

</llo_original>
